<compile_context>
chip_gen: v6e
topology: v6e:2x2x1
jax: 0.10.0
libtpu: 0.0.40
codegen_flags: <defaults>
</compile_context>

<pallas_src>
import jax
import jax.numpy as jnp
from jax.experimental import pallas as pl
from jax.experimental.pallas import tpu as pltpu


# --------------------------------------------------------------------------
# Pallas kernel: BB batch elements per grid step.
# --------------------------------------------------------------------------
def _net_kernel(obj_ref, ems_ref, bias_ref,
                w_obj_ref, b_obj_ref, w_ems_ref, b_ems_ref, w_qk_ref,
                probs_ref):
    _, BB, Nb, Kobj = obj_ref.shape
    Ne = ems_ref.shape[2]
    ems_dim = ems_ref.shape[3]
    H = w_obj_ref.shape[1]

    # --- ObjectEncoder: fused (box ++ prec) -> hidden (one matmul) ----------
    obj = obj_ref[0].reshape(BB * Nb, Kobj)                        # bf16
    h_box = jnp.tanh(
        jnp.dot(obj, w_obj_ref[...], preferred_element_type=jnp.float32)
        + b_obj_ref[...])                                          # (BB*Nb, H) f32

    # --- SpaceEncoder: ems -> hidden -----------------------------------------
    ems = ems_ref[0].reshape(BB * Ne, ems_dim)                     # bf16
    h_ems = jnp.tanh(
        jnp.dot(ems, w_ems_ref[...], preferred_element_type=jnp.float32)
        + b_ems_ref[...])                                          # (BB*Ne, H) f32

    # --- CrossTransformer scores: (h_ems Wq)(h_box Wk)^T == h_ems (Wq Wk^T) h_box^T
    q = jnp.dot(h_ems.astype(w_qk_ref.dtype), w_qk_ref[...],
                preferred_element_type=jnp.float32)                # (BB*Ne, H)
    scale = 1.0 / jnp.sqrt(jnp.float32(H))
    scores = jnp.einsum(
        'beh,bnh->ben',
        q.reshape(BB, Ne, H).astype(jnp.bfloat16),
        h_box.reshape(BB, Nb, H).astype(jnp.bfloat16),
        preferred_element_type=jnp.float32) * scale                # (BB, Ne, Nb)

    # --- Net-level masking + softmax over the flattened (Ne*Nb) actions ------
    logits = scores + bias_ref[0]                                  # (BB, Ne, Nb)
    m = jnp.max(jnp.max(logits, axis=-1, keepdims=True),
                axis=-2, keepdims=True)                            # (BB, 1, 1)
    e = jnp.exp(logits - m)
    denom = jnp.sum(jnp.sum(e, axis=-1, keepdims=True),
                    axis=-2, keepdims=True)                        # (BB, 1, 1)
    denom = jnp.maximum(denom, jnp.float32(1e-30))   # guard fully-masked rows
    probs_ref[0] = e * pl.reciprocal(denom)          # exact reciprocal (EUP)


# --------------------------------------------------------------------------
# Wrapper: fuse inputs / weights / masks, build batch-blocked grid.
# --------------------------------------------------------------------------
@jax.jit
def net_forward(params, box, prec, ems, ems_mask, valid_mask, access_mask,
                ems_to_box_mask):
    B, Nb, box_dim = box.shape
    prec_dim = prec.shape[-1]
    Ne, ems_dim = ems.shape[1], ems.shape[2]
    H = params['w_ems'].shape[1]
    Kobj = box_dim + prec_dim

    # Fused ObjectEncoder input / weight.
    obj_feat = jnp.concatenate([box, prec], axis=-1)                    # (B, Nb, Kobj)
    w_obj = jnp.concatenate([params['w_box'], params['w_prec']], axis=0)
    # Algebraic fusion of the q / k projections.
    w_qk = jnp.dot(params['wq'], params['wk'].T)                        # (H, H)

    # Combined additive log-mask bias, built once outside the kernel.
    # TODO(synk): quoted Net.forward only adds log(valid*access); the ems_mask
    # and ems_to_box_mask terms assume the canonical masked CrossTransformer.
    neg = jnp.float32(-1e30)
    box_log = jnp.where((valid_mask * access_mask) > 0, 0.0, neg)[:, None, :]
    ems_log = jnp.where(ems_mask > 0, 0.0, neg)[:, :, None]
    e2b_log = jnp.where(ems_to_box_mask > 0, 0.0, neg)
    bias = (box_log + ems_log + e2b_log).astype(jnp.float32)            # (B, Ne, Nb)

    # Batch blocking: fold many elements per grid step (amortize pipeline
    # overhead) but keep >=2 steps so both v7x TensorCores get work.
    BB = max(1, min(128, (B + 1) // 2))
    G = -(-B // BB)
    Bpad = G * BB
    pad = Bpad - B
    if pad:
        obj_feat = jnp.pad(obj_feat, ((0, pad), (0, 0), (0, 0)))
        ems = jnp.pad(ems, ((0, pad), (0, 0), (0, 0)))
        bias = jnp.pad(bias, ((0, pad), (0, 0), (0, 0)))

    obj_b = obj_feat.reshape(G, BB, Nb, Kobj).astype(jnp.bfloat16)
    ems_b = ems.reshape(G, BB, Ne, ems_dim).astype(jnp.bfloat16)
    bias_b = bias.reshape(G, BB, Ne, Nb)

    w_obj_b = w_obj.astype(jnp.bfloat16)
    w_ems_b = params['w_ems'].astype(jnp.bfloat16)
    w_qk_b = w_qk.astype(jnp.bfloat16)
    b_obj = params['b_obj'].astype(jnp.float32)
    b_ems = params['b_ems'].astype(jnp.float32)

    def full(shape):
        return pl.BlockSpec(shape, lambda i: (0,) * len(shape))

    flops = 2 * Bpad * (Nb * Kobj * H + Ne * ems_dim * H + Ne * H * H
                        + Ne * H * Nb)
    transcendentals = Bpad * (Nb * H + Ne * H + Ne * Nb)
    bytes_accessed = ((obj_b.size + ems_b.size + w_obj_b.size + w_ems_b.size
                       + w_qk_b.size) * 2
                      + (bias_b.size + b_obj.size + b_ems.size
                         + Bpad * Ne * Nb) * 4)

    out = pl.pallas_call(
        _net_kernel,
        out_shape=jax.ShapeDtypeStruct((G, BB, Ne, Nb), jnp.float32),
        grid_spec=pl.GridSpec(
            grid=(G,),
            in_specs=[
                pl.BlockSpec((1, BB, Nb, Kobj), lambda i: (i, 0, 0, 0)),   # obj feats
                pl.BlockSpec((1, BB, Ne, ems_dim), lambda i: (i, 0, 0, 0)),# ems
                pl.BlockSpec((1, BB, Ne, Nb), lambda i: (i, 0, 0, 0)),     # mask bias
                full((Kobj, H)),      # w_obj (w_box ++ w_prec)
                full((1, H)),         # b_obj
                full((ems_dim, H)),   # w_ems
                full((1, H)),         # b_ems
                full((H, H)),         # w_qk = Wq @ Wk^T
            ],
            out_specs=pl.BlockSpec((1, BB, Ne, Nb), lambda i: (i, 0, 0, 0)),
        ),
        compiler_params=pltpu.CompilerParams(
            dimension_semantics=("parallel",)),
        cost_estimate=pl.CostEstimate(flops=flops,
                                      transcendentals=transcendentals,
                                      bytes_accessed=bytes_accessed),
    )(obj_b, ems_b, bias_b, w_obj_b, b_obj, w_ems_b, b_ems, w_qk_b)

    probs = out.reshape(Bpad, Ne * Nb)[:B]   # softmax already normalized in-kernel
    state = None
    return probs, state


# --------------------------------------------------------------------------
# Deterministic parameter init (xavier-uniform, matching nn.init.xavier_uniform_)
# --------------------------------------------------------------------------
def init_params(key, box_dim, prec_dim, ems_dim, hidden_dim):
    def xavier(k, shape):
        fan_in, fan_out = shape[0], shape[1]
        bound = jnp.sqrt(6.0 / (fan_in + fan_out))
        return jax.random.uniform(k, shape, jnp.float32, -bound, bound)

    ks = jax.random.split(key, 6)
    return {
        'w_box':  xavier(ks[0], (box_dim, hidden_dim)),
        'w_prec': xavier(ks[1], (prec_dim, hidden_dim)),
        'b_obj':  jnp.zeros((1, hidden_dim), jnp.float32),
        'w_ems':  xavier(ks[2], (ems_dim, hidden_dim)),
        'b_ems':  jnp.zeros((1, hidden_dim), jnp.float32),
        'wq':     xavier(ks[3], (hidden_dim, hidden_dim)),
        'wk':     xavier(ks[4], (hidden_dim, hidden_dim)),
    }


if __name__ == "__main__":
    # small shapes consistent with the bin-packing Net forward
    B, Nb, Ne = 2, 8, 8          # batch, box_state_num, ems_num
    box_dim, prec_dim, ems_dim, hidden_dim = 6, 8, 6, 32

    key = jax.random.PRNGKey(0)
    k_p, k_box, k_prec, k_ems, k_m1, k_m2, k_m3, k_m4 = jax.random.split(key, 8)

    params = init_params(k_p, box_dim, prec_dim, ems_dim, hidden_dim)

    # TODO(synk): obs_to_tensor parses a python dict observation; tensors are
    # constructed directly here instead.
    box = jax.random.normal(k_box, (B, Nb, box_dim), jnp.float32)
    prec = jax.random.normal(k_prec, (B, Nb, prec_dim), jnp.float32)
    ems = jax.random.normal(k_ems, (B, Ne, ems_dim), jnp.float32)

    valid_mask = (jax.random.uniform(k_m1, (B, Nb)) > 0.2).astype(jnp.float32)
    access_mask = (jax.random.uniform(k_m2, (B, Nb)) > 0.2).astype(jnp.float32)
    ems_mask = (jax.random.uniform(k_m3, (B, Ne)) > 0.2).astype(jnp.float32)
    ems_to_box_mask = (jax.random.uniform(k_m4, (B, Ne, Nb)) > 0.2).astype(jnp.float32)
    # guarantee at least one valid action per batch element
    valid_mask = valid_mask.at[:, 0].set(1.0)
    access_mask = access_mask.at[:, 0].set(1.0)
    ems_mask = ems_mask.at[:, 0].set(1.0)
    ems_to_box_mask = ems_to_box_mask.at[:, 0, 0].set(1.0)

    probs, state = net_forward(params, box, prec, ems, ems_mask,
                               valid_mask, access_mask, ems_to_box_mask)
    probs = jax.block_until_ready(probs)

    assert probs.shape == (B, Ne * Nb)
    assert bool(jnp.all(jnp.isfinite(probs)))
    assert bool(jnp.allclose(jnp.sum(probs, axis=1), 1.0, atol=1e-5))
    print("KERNEL_OK")
</pallas_src>

<mosaic_0001>
module attributes {stable_mosaic.version = 11 : i64} {
  func.func @_net_kernel(%arg0: i32, %arg1: memref<1x1x8x14xbf16, #tpu.memory_space<vmem>>, %arg2: memref<1x1x8x6xbf16, #tpu.memory_space<vmem>>, %arg3: memref<1x1x8x8xf32, #tpu.memory_space<vmem>>, %arg4: memref<14x32xbf16, #tpu.memory_space<vmem>>, %arg5: memref<1x32xf32, #tpu.memory_space<vmem>>, %arg6: memref<6x32xbf16, #tpu.memory_space<vmem>>, %arg7: memref<1x32xf32, #tpu.memory_space<vmem>>, %arg8: memref<32x32xbf16, #tpu.memory_space<vmem>>, %arg9: memref<1x1x8x8xf32, #tpu.memory_space<vmem>>) attributes {dimension_semantics = [#tpu.dimension_semantics<parallel>], iteration_bounds = array<i64: 2>, scalar_prefetch = 0 : i64, scratch_operands = 0 : i64, tpu.core_type = #tpu.core_type<tc>, window_params = [{transform_indices = @transform_0, window_bounds = array<i64: 1, 1, 8, 14>}, {transform_indices = @transform_1, window_bounds = array<i64: 1, 1, 8, 6>}, {transform_indices = @transform_2, window_bounds = array<i64: 1, 1, 8, 8>}, {pipeline_mode = #tpu.pipeline_mode<synchronous>, transform_indices = @transform_3, window_bounds = array<i64: 14, 32>}, {pipeline_mode = #tpu.pipeline_mode<synchronous>, transform_indices = @transform_4, window_bounds = array<i64: 1, 32>}, {pipeline_mode = #tpu.pipeline_mode<synchronous>, transform_indices = @transform_5, window_bounds = array<i64: 6, 32>}, {pipeline_mode = #tpu.pipeline_mode<synchronous>, transform_indices = @transform_6, window_bounds = array<i64: 1, 32>}, {pipeline_mode = #tpu.pipeline_mode<synchronous>, transform_indices = @transform_7, window_bounds = array<i64: 32, 32>}, {transform_indices = @transform_8, window_bounds = array<i64: 1, 1, 8, 8>}]} {
    %c0 = arith.constant 0 : index
    %c0_0 = arith.constant 0 : index
    %c0_1 = arith.constant 0 : index
    %c0_2 = arith.constant 0 : index
    %0 = vector.load %arg1[%c0, %c0_0, %c0_1, %c0_2] : memref<1x1x8x14xbf16, #tpu.memory_space<vmem>>, vector<1x1x8x14xbf16>
    %1 = vector.shape_cast %0 : vector<1x1x8x14xbf16> to vector<1x8x14xbf16>
    %2 = vector.shape_cast %1 : vector<1x8x14xbf16> to vector<8x14xbf16>
    %c0_3 = arith.constant 0 : index
    %c0_4 = arith.constant 0 : index
    %3 = vector.load %arg4[%c0_3, %c0_4] : memref<14x32xbf16, #tpu.memory_space<vmem>>, vector<14x32xbf16>
    %cst = arith.constant dense<0.000000e+00> : vector<8x32xf32>
    %4 = tpu.matmul %2, %3, %cst {dimension_numbers = #tpu.dot_dimension_numbers<[1], [0], [0], [1], [0, 0, 1, 1], [], []>} : vector<8x14xbf16>, vector<14x32xbf16>, vector<8x32xf32> -> vector<8x32xf32>
    %c0_5 = arith.constant 0 : index
    %c0_6 = arith.constant 0 : index
    %5 = vector.load %arg5[%c0_5, %c0_6] : memref<1x32xf32, #tpu.memory_space<vmem>>, vector<1x32xf32>
    %6 = vector.broadcast %5 : vector<1x32xf32> to vector<8x32xf32>
    %7 = arith.addf %4, %6 : vector<8x32xf32>
    %8 = math.tanh %7 : vector<8x32xf32>
    %c0_7 = arith.constant 0 : index
    %c0_8 = arith.constant 0 : index
    %c0_9 = arith.constant 0 : index
    %c0_10 = arith.constant 0 : index
    %9 = vector.load %arg2[%c0_7, %c0_8, %c0_9, %c0_10] : memref<1x1x8x6xbf16, #tpu.memory_space<vmem>>, vector<1x1x8x6xbf16>
    %10 = vector.shape_cast %9 : vector<1x1x8x6xbf16> to vector<1x8x6xbf16>
    %11 = vector.shape_cast %10 : vector<1x8x6xbf16> to vector<8x6xbf16>
    %c0_11 = arith.constant 0 : index
    %c0_12 = arith.constant 0 : index
    %12 = vector.load %arg6[%c0_11, %c0_12] : memref<6x32xbf16, #tpu.memory_space<vmem>>, vector<6x32xbf16>
    %cst_13 = arith.constant dense<0.000000e+00> : vector<8x32xf32>
    %13 = tpu.matmul %11, %12, %cst_13 {dimension_numbers = #tpu.dot_dimension_numbers<[1], [0], [0], [1], [0, 0, 1, 1], [], []>} : vector<8x6xbf16>, vector<6x32xbf16>, vector<8x32xf32> -> vector<8x32xf32>
    %c0_14 = arith.constant 0 : index
    %c0_15 = arith.constant 0 : index
    %14 = vector.load %arg7[%c0_14, %c0_15] : memref<1x32xf32, #tpu.memory_space<vmem>>, vector<1x32xf32>
    %15 = vector.broadcast %14 : vector<1x32xf32> to vector<8x32xf32>
    %16 = arith.addf %13, %15 : vector<8x32xf32>
    %17 = math.tanh %16 : vector<8x32xf32>
    %18 = arith.truncf %17 : vector<8x32xf32> to vector<8x32xbf16>
    %c0_16 = arith.constant 0 : index
    %c0_17 = arith.constant 0 : index
    %19 = vector.load %arg8[%c0_16, %c0_17] : memref<32x32xbf16, #tpu.memory_space<vmem>>, vector<32x32xbf16>
    %cst_18 = arith.constant dense<0.000000e+00> : vector<8x32xf32>
    %20 = tpu.matmul %18, %19, %cst_18 {dimension_numbers = #tpu.dot_dimension_numbers<[1], [0], [0], [1], [0, 0, 1, 1], [], []>} : vector<8x32xbf16>, vector<32x32xbf16>, vector<8x32xf32> -> vector<8x32xf32>
    %cst_19 = arith.constant 3.200000e+01 : f32
    %21 = math.sqrt %cst_19 : f32
    %cst_20 = arith.constant 1.000000e+00 : f32
    %22 = arith.divf %cst_20, %21 : f32
    %23 = vector.shape_cast %20 : vector<8x32xf32> to vector<1x8x32xf32>
    %24 = arith.truncf %23 : vector<1x8x32xf32> to vector<1x8x32xbf16>
    %25 = vector.shape_cast %8 : vector<8x32xf32> to vector<1x8x32xf32>
    %26 = arith.truncf %25 : vector<1x8x32xf32> to vector<1x8x32xbf16>
    "tpu.trace_start"() <{level = 10 : i32, message = "beh,bnh->ben"}> : () -> ()
    %cst_21 = arith.constant dense<0.000000e+00> : vector<1x8x8xf32>
    %27 = tpu.matmul %24, %26, %cst_21 {dimension_numbers = #tpu.dot_dimension_numbers<[2], [2], [1], [1], [0, 0, 0, 1, 1, 1], [0], [0]>} : vector<1x8x32xbf16>, vector<1x8x32xbf16>, vector<1x8x8xf32> -> vector<1x8x8xf32>
    "tpu.trace_stop"() : () -> ()
    %28 = vector.broadcast %22 : f32 to vector<1x8x8xf32>
    %29 = arith.mulf %27, %28 : vector<1x8x8xf32>
    %c0_22 = arith.constant 0 : index
    %c0_23 = arith.constant 0 : index
    %c0_24 = arith.constant 0 : index
    %c0_25 = arith.constant 0 : index
    %30 = vector.load %arg3[%c0_22, %c0_23, %c0_24, %c0_25] : memref<1x1x8x8xf32, #tpu.memory_space<vmem>>, vector<1x1x8x8xf32>
    %31 = vector.shape_cast %30 : vector<1x1x8x8xf32> to vector<1x8x8xf32>
    %32 = arith.addf %29, %31 : vector<1x8x8xf32>
    %cst_26 = arith.constant dense<0xFF800000> : vector<1x8xf32>
    %33 = vector.multi_reduction <maximumf>, %32, %cst_26 [2] : vector<1x8x8xf32> to vector<1x8xf32>
    %34 = vector.shape_cast %33 : vector<1x8xf32> to vector<1x8x1xf32>
    %cst_27 = arith.constant dense<0xFF800000> : vector<1x1xf32>
    %35 = vector.multi_reduction <maximumf>, %34, %cst_27 [1] : vector<1x8x1xf32> to vector<1x1xf32>
    %36 = vector.shape_cast %35 : vector<1x1xf32> to vector<1x1x1xf32>
    %37 = vector.broadcast %36 : vector<1x1x1xf32> to vector<1x8x8xf32>
    %38 = arith.subf %32, %37 : vector<1x8x8xf32>
    %39 = math.exp %38 : vector<1x8x8xf32>
    %cst_28 = arith.constant dense<0.000000e+00> : vector<1x8xf32>
    %40 = vector.multi_reduction <add>, %39, %cst_28 [2] : vector<1x8x8xf32> to vector<1x8xf32>
    %41 = vector.shape_cast %40 : vector<1x8xf32> to vector<1x8x1xf32>
    %cst_29 = arith.constant dense<0.000000e+00> : vector<1x1xf32>
    %42 = vector.multi_reduction <add>, %41, %cst_29 [1] : vector<1x8x1xf32> to vector<1x1xf32>
    %43 = vector.shape_cast %42 : vector<1x1xf32> to vector<1x1x1xf32>
    %cst_30 = arith.constant 1.000000e-30 : f32
    %44 = vector.broadcast %cst_30 : f32 to vector<1x1x1xf32>
    %45 = arith.maximumf %43, %44 : vector<1x1x1xf32>
    %46 = tpu.reciprocal %45 : vector<1x1x1xf32> -> vector<1x1x1xf32>
    %47 = vector.broadcast %46 : vector<1x1x1xf32> to vector<1x8x8xf32>
    %48 = arith.mulf %39, %47 : vector<1x8x8xf32>
    %c0_31 = arith.constant 0 : index
    %c0_32 = arith.constant 0 : index
    %c0_33 = arith.constant 0 : index
    %c0_34 = arith.constant 0 : index
    %49 = vector.load %arg9[%c0_31, %c0_32, %c0_33, %c0_34] : memref<1x1x8x8xf32, #tpu.memory_space<vmem>>, vector<1x1x8x8xf32>
    %50 = vector.shape_cast %49 : vector<1x1x8x8xf32> to vector<1x8x8xf32>
    %51 = vector.shape_cast %48 : vector<1x8x8xf32> to vector<1x1x8x8xf32>
    tpu.vector_store %arg9[%c0_31, %c0_32, %c0_33, %c0_34], %51 {strides = array<i32>} : memref<1x1x8x8xf32, #tpu.memory_space<vmem>>, vector<1x1x8x8xf32>,
    return
  }
  func.func @transform_0(%arg0: i32) -> (i32, i32, i32, i32) {
    %c0_i32 = arith.constant 0 : i32
    %c0_i32_0 = arith.constant 0 : i32
    %c0_i32_1 = arith.constant 0 : i32
    %c0_i32_2 = arith.constant 0 : i32
    return %arg0, %c0_i32, %c0_i32_0, %c0_i32_1 : i32, i32, i32, i32
  }
  func.func @transform_1(%arg0: i32) -> (i32, i32, i32, i32) {
    %c0_i32 = arith.constant 0 : i32
    %c0_i32_0 = arith.constant 0 : i32
    %c0_i32_1 = arith.constant 0 : i32
    %c0_i32_2 = arith.constant 0 : i32
    return %arg0, %c0_i32, %c0_i32_0, %c0_i32_1 : i32, i32, i32, i32
  }
  func.func @transform_2(%arg0: i32) -> (i32, i32, i32, i32) {
    %c0_i32 = arith.constant 0 : i32
    %c0_i32_0 = arith.constant 0 : i32
    %c0_i32_1 = arith.constant 0 : i32
    %c0_i32_2 = arith.constant 0 : i32
    return %arg0, %c0_i32, %c0_i32_0, %c0_i32_1 : i32, i32, i32, i32
  }
  func.func @transform_3(%arg0: i32) -> (i32, i32) {
    %c0_i32 = arith.constant 0 : i32
    %c0_i32_0 = arith.constant 0 : i32
    %c0_i32_1 = arith.constant 0 : i32
    return %c0_i32, %c0_i32_0 : i32, i32
  }
  func.func @transform_4(%arg0: i32) -> (i32, i32) {
    %c0_i32 = arith.constant 0 : i32
    %c0_i32_0 = arith.constant 0 : i32
    %c0_i32_1 = arith.constant 0 : i32
    return %c0_i32, %c0_i32_0 : i32, i32
  }
  func.func @transform_5(%arg0: i32) -> (i32, i32) {
    %c0_i32 = arith.constant 0 : i32
    %c0_i32_0 = arith.constant 0 : i32
    %c0_i32_1 = arith.constant 0 : i32
    return %c0_i32, %c0_i32_0 : i32, i32
  }
  func.func @transform_6(%arg0: i32) -> (i32, i32) {
    %c0_i32 = arith.constant 0 : i32
    %c0_i32_0 = arith.constant 0 : i32
    %c0_i32_1 = arith.constant 0 : i32
    return %c0_i32, %c0_i32_0 : i32, i32
  }
  func.func @transform_7(%arg0: i32) -> (i32, i32) {
    %c0_i32 = arith.constant 0 : i32
    %c0_i32_0 = arith.constant 0 : i32
    %c0_i32_1 = arith.constant 0 : i32
    return %c0_i32, %c0_i32_0 : i32, i32
  }
  func.func @transform_8(%arg0: i32) -> (i32, i32, i32, i32) {
    %c0_i32 = arith.constant 0 : i32
    %c0_i32_0 = arith.constant 0 : i32
    %c0_i32_1 = arith.constant 0 : i32
    %c0_i32_2 = arith.constant 0 : i32
    return %arg0, %c0_i32, %c0_i32_0, %c0_i32_1 : i32, i32, i32, i32
  }
}

</mosaic_0001>

<llo_original>
// kernel: net_forward.1
$region0: #{net_forward.1}
  #allocation0 [shape = 'u32[]', space=smem, size = 0x4, offset = 0x4, fixed_abs, tag = 'smem constant byte address 0x4 - core index']
  #allocation1 [shape = 'u32[144,128]{1,0:T(1,128)}', space=vmem, size = 0x12000, scoped, tag = 'internal scratch']
  %s0 = inlined_call_operand.vmem [shape: bf16[2,1,8,14], index: 0, kind: input, shape index: {}]
  %s1 = inlined_call_operand.vmem [shape: bf16[2,1,8,6], index: 1, kind: input, shape index: {}]
  %s2 = inlined_call_operand.vmem [shape: f32[2,1,8,8], index: 2, kind: input, shape index: {}]
  %s3 = inlined_call_operand.vmem [shape: bf16[14,32], index: 3, kind: input, shape index: {}]
  %s4 = inlined_call_operand.vmem [shape: f32[1,32], index: 4, kind: input, shape index: {}]
  %s5 = inlined_call_operand.vmem [shape: bf16[6,32], index: 5, kind: input, shape index: {}]
  %s6 = inlined_call_operand.vmem [shape: f32[1,32], index: 6, kind: input, shape index: {}]
  %s7 = inlined_call_operand.vmem [shape: bf16[32,32], index: 7, kind: input, shape index: {}]
  %s8 = inlined_call_operand.vmem [shape: f32[2,1,8,8], index: 8, kind: output, shape index: {}]
  %s9 = sld [smem:[#allocation0]]
  $region65: #{net_forward.1} parent=0
    _
  %s11 = ssub.s32 1, %s9
  %s12 = scalar_select 0, %s11, %s9
  loop: start=0, step=1, limit=4
  $region2: #{net_forward.1} parent=0 // loop_pre_header
    _
  $region3: #{net_forward.1} parent=0 // loop_header
    %s14 = sphi 0, %s18
    %p15 = scmp.ge.s32.totalorder %s14, 4
    %s24 = sphi 0, %s26
    %s27 = sphi 0, %s24
    %s28 = sphi 0, %s27
    %s44 = sphi 0, %s28
    %s50 = sphi 0, %s52
    %s53 = sphi 0, %s50
    %s54 = sphi 0, %s53
    %s70 = sphi 0, %s54
    %s76 = sphi 0, %s78
    %s79 = sphi 0, %s76
    %s80 = sphi 0, %s79
    %s96 = sphi 0, %s80
    %s100 = sphi 0, %s100
    %s102 = sphi 0, %s100
    %s103 = sphi 0, %s102
    %s117 = sphi 0, %s103
    %s121 = sphi 0, %s121
    %s123 = sphi 0, %s121
    %s124 = sphi 0, %s123
    %s138 = sphi 0, %s124
    %s142 = sphi 0, %s142
    %s144 = sphi 0, %s142
    %s145 = sphi 0, %s144
    %s159 = sphi 0, %s145
    %s163 = sphi 0, %s163
    %s165 = sphi 0, %s163
    %s166 = sphi 0, %s165
    %s180 = sphi 0, %s166
    %s184 = sphi 0, %s184
    %s186 = sphi 0, %s184
    %s187 = sphi 0, %s186
    %s201 = sphi 0, %s187
    %s207 = sphi 0, %s209
    %s210 = sphi 0, %s207
    %s211 = sphi 0, %s210
    %s227 = sphi 0, %s211
  $region4: #{net_forward.1} parent=0 // loop_header_branch
    %17 = sbr.rel (%p15) target = $region8
  $region5: #{net_forward.1} parent=0 // loop_body
    %s19 = ssub.s32 %s14, 1
    %s20 = ssub.s32 %s14, 2
    %s21 = sadd.s32 %s14, 1
    %s22 = ssub.s32 %s14, %s21
    %p23 = scmp.eq.s32.totalorder %s22, 0
    %s25 = sadd.s32 %s24, 1
    %s26 = scalar_select %p23, %s24, %s25
    %p29 = pneg %p23
    %p30 = scmp.eq.s32.totalorder %s14, 1
    %p31 = por %p29, %p30
    %p32 = scmp.ne.s32.totalorder %s24, %s27
    %p33 = scmp.eq.s32.totalorder %s14, 0
    %p34 = por %p32, %p33
    %p35 = scmp.ne.s32.totalorder %s24, %s27
    %p36 = scmp.eq.s32.totalorder %s19, 1
    %p37 = por %p35, %p36
    %p38 = scmp.ne.s32.totalorder %s27, %s28
    %p39 = scmp.eq.s32.totalorder %s19, 0
    %p40 = por %p38, %p39
    %p41 = scmp.ne.s32.totalorder %s27, %s28
    %p42 = scmp.eq.s32.totalorder %s20, 1
    %p43 = por %p41, %p42
    %p45 = scmp.ne.s32.totalorder %s28, %s44
    %p46 = scmp.eq.s32.totalorder %s20, 0
    %p47 = por %p45, %p46
    %s48 = ssub.s32 %s14, %s21
    %p49 = scmp.eq.s32.totalorder %s48, 0
    %s51 = sadd.s32 %s50, 1
    %s52 = scalar_select %p49, %s50, %s51
    %p55 = pneg %p49
    %p56 = scmp.eq.s32.totalorder %s14, 1
    %p57 = por %p55, %p56
    %p58 = scmp.ne.s32.totalorder %s50, %s53
    %p59 = scmp.eq.s32.totalorder %s14, 0
    %p60 = por %p58, %p59
    %p61 = scmp.ne.s32.totalorder %s50, %s53
    %p62 = scmp.eq.s32.totalorder %s19, 1
    %p63 = por %p61, %p62
    %p64 = scmp.ne.s32.totalorder %s53, %s54
    %p65 = scmp.eq.s32.totalorder %s19, 0
    %p66 = por %p64, %p65
    %p67 = scmp.ne.s32.totalorder %s53, %s54
    %p68 = scmp.eq.s32.totalorder %s20, 1
    %p69 = por %p67, %p68
    %p71 = scmp.ne.s32.totalorder %s54, %s70
    %p72 = scmp.eq.s32.totalorder %s20, 0
    %p73 = por %p71, %p72
    %s74 = ssub.s32 %s14, %s21
    %p75 = scmp.eq.s32.totalorder %s74, 0
    %s77 = sadd.s32 %s76, 1
    %s78 = scalar_select %p75, %s76, %s77
    %p81 = pneg %p75
    %p82 = scmp.eq.s32.totalorder %s14, 1
    %p83 = por %p81, %p82
    %p84 = scmp.ne.s32.totalorder %s76, %s79
    %p85 = scmp.eq.s32.totalorder %s14, 0
    %p86 = por %p84, %p85
    %p87 = scmp.ne.s32.totalorder %s76, %s79
    %p88 = scmp.eq.s32.totalorder %s19, 1
    %p89 = por %p87, %p88
    %p90 = scmp.ne.s32.totalorder %s79, %s80
    %p91 = scmp.eq.s32.totalorder %s19, 0
    %p92 = por %p90, %p91
    %p93 = scmp.ne.s32.totalorder %s79, %s80
    %p94 = scmp.eq.s32.totalorder %s20, 1
    %p95 = por %p93, %p94
    %p97 = scmp.ne.s32.totalorder %s80, %s96
    %p98 = scmp.eq.s32.totalorder %s20, 0
    %p99 = por %p97, %p98
    %s101 = sadd.s32 %s100, 1
    %p104 = scmp.eq.s32.totalorder %s14, 1
    %p105 = scmp.ne.s32.totalorder %s100, %s102
    %p106 = scmp.eq.s32.totalorder %s14, 0
    %p107 = por %p105, %p106
    %p108 = scmp.ne.s32.totalorder %s100, %s102
    %p109 = scmp.eq.s32.totalorder %s19, 1
    %p110 = por %p108, %p109
    %p111 = scmp.ne.s32.totalorder %s102, %s103
    %p112 = scmp.eq.s32.totalorder %s19, 0
    %p113 = por %p111, %p112
    %p114 = scmp.ne.s32.totalorder %s102, %s103
    %p115 = scmp.eq.s32.totalorder %s20, 1
    %p116 = por %p114, %p115
    %p118 = scmp.ne.s32.totalorder %s103, %s117
    %p119 = scmp.eq.s32.totalorder %s20, 0
    %p120 = por %p118, %p119
    %s122 = sadd.s32 %s121, 1
    %p125 = scmp.eq.s32.totalorder %s14, 1
    %p126 = scmp.ne.s32.totalorder %s121, %s123
    %p127 = scmp.eq.s32.totalorder %s14, 0
    %p128 = por %p126, %p127
    %p129 = scmp.ne.s32.totalorder %s121, %s123
    %p130 = scmp.eq.s32.totalorder %s19, 1
    %p131 = por %p129, %p130
    %p132 = scmp.ne.s32.totalorder %s123, %s124
    %p133 = scmp.eq.s32.totalorder %s19, 0
    %p134 = por %p132, %p133
    %p135 = scmp.ne.s32.totalorder %s123, %s124
    %p136 = scmp.eq.s32.totalorder %s20, 1
    %p137 = por %p135, %p136
    %p139 = scmp.ne.s32.totalorder %s124, %s138
    %p140 = scmp.eq.s32.totalorder %s20, 0
    %p141 = por %p139, %p140
    %s143 = sadd.s32 %s142, 1
    %p146 = scmp.eq.s32.totalorder %s14, 1
    %p147 = scmp.ne.s32.totalorder %s142, %s144
    %p148 = scmp.eq.s32.totalorder %s14, 0
    %p149 = por %p147, %p148
    %p150 = scmp.ne.s32.totalorder %s142, %s144
    %p151 = scmp.eq.s32.totalorder %s19, 1
    %p152 = por %p150, %p151
    %p153 = scmp.ne.s32.totalorder %s144, %s145
    %p154 = scmp.eq.s32.totalorder %s19, 0
    %p155 = por %p153, %p154
    %p156 = scmp.ne.s32.totalorder %s144, %s145
    %p157 = scmp.eq.s32.totalorder %s20, 1
    %p158 = por %p156, %p157
    %p160 = scmp.ne.s32.totalorder %s145, %s159
    %p161 = scmp.eq.s32.totalorder %s20, 0
    %p162 = por %p160, %p161
    %s164 = sadd.s32 %s163, 1
    %p167 = scmp.eq.s32.totalorder %s14, 1
    %p168 = scmp.ne.s32.totalorder %s163, %s165
    %p169 = scmp.eq.s32.totalorder %s14, 0
    %p170 = por %p168, %p169
    %p171 = scmp.ne.s32.totalorder %s163, %s165
    %p172 = scmp.eq.s32.totalorder %s19, 1
    %p173 = por %p171, %p172
    %p174 = scmp.ne.s32.totalorder %s165, %s166
    %p175 = scmp.eq.s32.totalorder %s19, 0
    %p176 = por %p174, %p175
    %p177 = scmp.ne.s32.totalorder %s165, %s166
    %p178 = scmp.eq.s32.totalorder %s20, 1
    %p179 = por %p177, %p178
    %p181 = scmp.ne.s32.totalorder %s166, %s180
    %p182 = scmp.eq.s32.totalorder %s20, 0
    %p183 = por %p181, %p182
    %s185 = sadd.s32 %s184, 1
    %p188 = scmp.eq.s32.totalorder %s14, 1
    %p189 = scmp.ne.s32.totalorder %s184, %s186
    %p190 = scmp.eq.s32.totalorder %s14, 0
    %p191 = por %p189, %p190
    %p192 = scmp.ne.s32.totalorder %s184, %s186
    %p193 = scmp.eq.s32.totalorder %s19, 1
    %p194 = por %p192, %p193
    %p195 = scmp.ne.s32.totalorder %s186, %s187
    %p196 = scmp.eq.s32.totalorder %s19, 0
    %p197 = por %p195, %p196
    %p198 = scmp.ne.s32.totalorder %s186, %s187
    %p199 = scmp.eq.s32.totalorder %s20, 1
    %p200 = por %p198, %p199
    %p202 = scmp.ne.s32.totalorder %s187, %s201
    %p203 = scmp.eq.s32.totalorder %s20, 0
    %p204 = por %p202, %p203
    %s205 = ssub.s32 %s14, %s21
    %p206 = scmp.eq.s32.totalorder %s205, 0
    %s208 = sadd.s32 %s207, 1
    %s209 = scalar_select %p206, %s207, %s208
    %p212 = pneg %p206
    %p213 = scmp.eq.s32.totalorder %s14, 1
    %p214 = por %p212, %p213
    %p215 = scmp.ne.s32.totalorder %s207, %s210
    %p216 = scmp.eq.s32.totalorder %s14, 0
    %p217 = por %p215, %p216
    %p218 = scmp.ne.s32.totalorder %s207, %s210
    %p219 = scmp.eq.s32.totalorder %s19, 1
    %p220 = por %p218, %p219
    %p221 = scmp.ne.s32.totalorder %s210, %s211
    %p222 = scmp.eq.s32.totalorder %s19, 0
    %p223 = por %p221, %p222
    %p224 = scmp.ne.s32.totalorder %s210, %s211
    %p225 = scmp.eq.s32.totalorder %s20, 1
    %p226 = por %p224, %p225
    %p228 = scmp.ne.s32.totalorder %s211, %s227
    %p229 = scmp.eq.s32.totalorder %s20, 0
    %p230 = por %p228, %p229
    %p231 = scmp.le.s32.totalorder 1, %s14
    %p232 = scmp.lt.s32.totalorder %s14, 3
    %p233 = pnand %p231, %p232
    %p234 = pneg %p233
    // Predicated region
    $region9: #{net_forward.1} parent=5 // pred_check
      _
    $region10: #{net_forward.1} parent=5 // pred_check_branch
      %236 = sbr.rel (%p233) target = $region12
    $region11: #{net_forward.1} parent=5 // pred_region
      %s237 = ssub.s32 %s14, 1
      // Predicated region
      $region13: #{net_forward.1} parent=11 // pred_check
        %p238 = pneg %p113
      $region14: #{net_forward.1} parent=11 // pred_check_branch
        %240 = sbr.rel (%p238) target = $region16
      $region15: #{net_forward.1} parent=11 // pred_region
        _
      $region16: #{net_forward.1} parent=11 // pred_fallthru
        _
      // Predicated region
      $region17: #{net_forward.1} parent=11 // pred_check
        %p241 = pneg %p134
      $region18: #{net_forward.1} parent=11 // pred_check_branch
        %243 = sbr.rel (%p241) target = $region20
      $region19: #{net_forward.1} parent=11 // pred_region
        _
      $region20: #{net_forward.1} parent=11 // pred_fallthru
        _
      // Predicated region
      $region21: #{net_forward.1} parent=11 // pred_check
        %p244 = pneg %p155
      $region22: #{net_forward.1} parent=11 // pred_check_branch
        %246 = sbr.rel (%p244) target = $region24
      $region23: #{net_forward.1} parent=11 // pred_region
        _
      $region24: #{net_forward.1} parent=11 // pred_fallthru
        _
      // Predicated region
      $region25: #{net_forward.1} parent=11 // pred_check
        %p247 = pneg %p176
      $region26: #{net_forward.1} parent=11 // pred_check_branch
        %249 = sbr.rel (%p247) target = $region28
      $region27: #{net_forward.1} parent=11 // pred_region
        _
      $region28: #{net_forward.1} parent=11 // pred_fallthru
        _
      // Predicated region
      $region29: #{net_forward.1} parent=11 // pred_check
        %p250 = pneg %p197
      $region30: #{net_forward.1} parent=11 // pred_check_branch
        %252 = sbr.rel (%p250) target = $region32
      $region31: #{net_forward.1} parent=11 // pred_region
        _
      $region32: #{net_forward.1} parent=11 // pred_fallthru
        _
    $region12: #{net_forward.1} parent=5 // pred_fallthru
      _
    %p253 = scmp.lt.s32.totalorder %s14, 2
    // Predicated region
    $region33: #{net_forward.1} parent=5 // pred_check
      %p254 = pneg %p253
    $region34: #{net_forward.1} parent=5 // pred_check_branch
      %256 = sbr.rel (%p254) target = $region36
    $region35: #{net_forward.1} parent=5 // pred_region
      // Predicated region
      $region37: #{net_forward.1} parent=35 // pred_check
        %p257 = pneg %p34
      $region38: #{net_forward.1} parent=35 // pred_check_branch
        %259 = sbr.rel (%p257) target = $region40
      $region39: #{net_forward.1} parent=35 // pred_region
        %p260 = scmp.lt.s32.totalorder %s14, 1
        %s261 = scalar_select %p260, %s14, 1
        %s262 = smul.addr %s261, 4
        %s263 = scalar_lea.vmem %s0, %s262
      $region40: #{net_forward.1} parent=35 // pred_fallthru
        _
      // Predicated region
      $region41: #{net_forward.1} parent=35 // pred_check
        %p264 = pneg %p60
      $region42: #{net_forward.1} parent=35 // pred_check_branch
        %266 = sbr.rel (%p264) target = $region44
      $region43: #{net_forward.1} parent=35 // pred_region
        %p267 = scmp.lt.s32.totalorder %s14, 1
        %s268 = scalar_select %p267, %s14, 1
        %s269 = smul.addr %s268, 4
        %s270 = scalar_lea.vmem %s1, %s269
      $region44: #{net_forward.1} parent=35 // pred_fallthru
        _
      // Predicated region
      $region45: #{net_forward.1} parent=35 // pred_check
        %p271 = pneg %p86
      $region46: #{net_forward.1} parent=35 // pred_check_branch
        %273 = sbr.rel (%p271) target = $region48
      $region47: #{net_forward.1} parent=35 // pred_region
        %p274 = scmp.lt.s32.totalorder %s14, 1
        %s275 = scalar_select %p274, %s14, 1
        %s276 = smul.addr %s275, 8
        %s277 = scalar_lea.vmem %s2, %s276
      $region48: #{net_forward.1} parent=35 // pred_fallthru
        _
    $region36: #{net_forward.1} parent=5 // pred_fallthru
      _
    %p278 = scmp.le.s32.totalorder 1, %s14
    %p279 = scmp.lt.s32.totalorder %s14, 3
    %p280 = pnand %p278, %p279
    %p281 = pneg %p280
    // Predicated region
    $region49: #{net_forward.1} parent=5 // pred_check
      _
    $region50: #{net_forward.1} parent=5 // pred_check_branch
      %283 = sbr.rel (%p280) target = $region52
    $region51: #{net_forward.1} parent=5 // pred_region
      %s284 = ssub.s32 %s14, 1
      %p285 = scmp.lt.s32.totalorder %s19, 1
      %s286 = scalar_select %p285, %s19, 1
      %s287 = smul.addr %s286, 4
      %s288 = scalar_lea.vmem %s0, %s287
      %p289 = pneg %p40
      %p290 = pneg %p37
      %p291 = scmp.lt.s32.totalorder %s19, 1
      %s292 = scalar_select %p291, %s19, 1
      %s293 = smul.addr %s292, 4
      %s294 = scalar_lea.vmem %s1, %s293
      %p295 = pneg %p66
      %p296 = pneg %p63
      %p297 = scmp.lt.s32.totalorder %s19, 1
      %s298 = scalar_select %p297, %s19, 1
      %s299 = smul.addr %s298, 8
      %s300 = scalar_lea.vmem %s2, %s299
      %p301 = pneg %p92
      %p302 = pneg %p89
      %p303 = pneg %p113
      %p304 = pneg %p110
      %p305 = pneg %p134
      %p306 = pneg %p131
      %p307 = pneg %p155
      %p308 = pneg %p152
      %p309 = pneg %p176
      %p310 = pneg %p173
      %p311 = pneg %p197
      %p312 = pneg %p194
      %p313 = pneg %p223
      %p314 = pneg %p220
      %p315 = scmp.lt.s32.totalorder %s19, 1
      %s316 = scalar_select %p315, %s19, 1
      %s317 = smul.addr %s316, 8
      %s318 = scalar_lea.vmem %s8, %s317
      %p319 = scmp.lt.s32.totalorder %s19, 1
      %s320 = scalar_select %p319, %s19, 1
      %s321 = smul.addr %s320, 4
      %s322 = scalar_lea.vmem %s0, %s321
      %p323 = scmp.lt.s32.totalorder %s19, 1
      %s324 = scalar_select %p323, %s19, 1
      %s325 = smul.addr %s324, 4
      %s326 = scalar_lea.vmem %s1, %s325
      %p327 = scmp.lt.s32.totalorder %s19, 1
      %s328 = scalar_select %p327, %s19, 1
      %s329 = smul.addr %s328, 8
      %s330 = scalar_lea.vmem %s2, %s329
      %p331 = scmp.lt.s32.totalorder %s19, 1
      %s332 = scalar_select %p331, %s19, 1
      %s333 = smul.addr %s332, 8
      %s334 = scalar_lea.vmem %s8, %s333
      %v336 = vld [vmem:[%s322] sm:$0xf]
      %v337 = vld [vmem:[%s3] sm:$0xf]
      %v338 = vld [vmem:[%s3 + $0x4] sm:$0x7]
      %v339 = vld [vmem:[%s4] sm:$0x1]
      %v341 = vlaneseq
      %v342 = vshrl.u32 %v341, 7
      %v343 = vsub.s32 0, %v342
      %v344 = vrot.slane %v339, %v343
      %v348 = vunpack.c.l.b16 %v337
      %v349 = vunpack.c.l.b16 %v338
      %v350 = vpack.c.b16 %v349, %v348
      %vm351 = vcmask 113664
      %v353 = vsel %vm351, %v336, 0
      %vm355 = vcmask 1046528
      %v357 = vsel %vm355, %v350, 0
      %359 = vmatprep.subr.bf16.mxu0 0
      %360 = vmatpush1.bf16.msra.mxu0 0
      %361 = vmatprep.subr.bf16.mxu0 0
      %362 = vmatpush1.bf16.msra.mxu0 0
      %363 = vmatprep.subr.bf16.mxu0 0
      %364 = vmatpush1.bf16.msra.mxu0 0
      %365 = vmatprep.subr.bf16.mxu0 0
      %366 = vmatpush1.bf16.msra.mxu0 0
      %367 = vmatprep.subr.bf16.mxu0 0
      %368 = vmatpush1.bf16.msra.mxu0 0
      %369 = vmatprep.subr.bf16.mxu0 0
      %370 = vmatpush1.bf16.msra.mxu0 0
      %371 = vmatprep.subr.bf16.mxu0 0
      %372 = vmatpush1.bf16.msra.mxu0 0
      %373 = vmatprep.subr.bf16.mxu0 0
      %374 = vmatpush1.bf16.msra.mxu0 %v357
      %375 = vmatprep.subr.bf16.mxu0 0
      %376 = vmatpush2.bf16.msra.mxu0 0
      %377 = vmatprep.subr.bf16.mxu0 0
      %378 = vmatpush2.bf16.msra.mxu0 0
      %379 = vmatprep.subr.bf16.mxu0 0
      %380 = vmatpush2.bf16.msra.mxu0 0
      %381 = vmatprep.subr.bf16.mxu0 0
      %382 = vmatpush2.bf16.msra.mxu0 0
      %383 = vmatprep.subr.bf16.mxu0 0
      %384 = vmatpush2.bf16.msra.mxu0 0
      %385 = vmatprep.subr.bf16.mxu0 0
      %386 = vmatpush2.bf16.msra.mxu0 0
      %387 = vmatprep.subr.bf16.mxu0 0
      %388 = vmatpush2.bf16.msra.mxu0 0
      %389 = vmatprep.subr.bf16.mxu0 0
      %390 = vmatpush2.bf16.msra.mxu0 0
      %391 = vmatprep.mubr.bf16.mxu0 0
      %392 = vmatmul.mubr.bf16.gmra.mxu0 %v353
      %v393 = vpop.f32.mrf.mxu0
      %v394 = vadd.f32 %v344, %v393
      %v395 = vpop.f32.mrf.mxu0
      %v396 = vpop.f32.mrf.mxu0
      %v397 = vpop.f32.mrf.mxu0
      %398 = vdwg.mxu0
      %v399 = vtanh.pop %v394
      %v400 = vld [vmem:[%s326] sm:$0xf]
      %v401 = vld [vmem:[%s5] sm:$0x7]
      %v402 = vld [vmem:[%s6] sm:$0x1]
      %v404 = vlaneseq
      %v405 = vshrl.u32 %v404, 7
      %v406 = vsub.s32 0, %v405
      %v407 = vrot.slane %v402, %v406
      %vm409 = vcmask 48128
      %v411 = vsel %vm409, %v400, 0
      %vm413 = vcmask 1042432
      %v415 = vsel %vm413, %v401, 0
      %417 = vmatprep.subr.bf16.mxu0 0
      %418 = vmatpush1.bf16.msra.mxu0 0
      %419 = vmatprep.subr.bf16.mxu0 0
      %420 = vmatpush1.bf16.msra.mxu0 0
      %421 = vmatprep.subr.bf16.mxu0 0
      %422 = vmatpush1.bf16.msra.mxu0 0
      %423 = vmatprep.subr.bf16.mxu0 0
      %424 = vmatpush1.bf16.msra.mxu0 0
      %425 = vmatprep.subr.bf16.mxu0 0
      %426 = vmatpush1.bf16.msra.mxu0 0
      %427 = vmatprep.subr.bf16.mxu0 0
      %428 = vmatpush1.bf16.msra.mxu0 0
      %429 = vmatprep.subr.bf16.mxu0 0
      %430 = vmatpush1.bf16.msra.mxu0 0
      %431 = vmatprep.subr.bf16.mxu0 0
      %432 = vmatpush1.bf16.msra.mxu0 %v415
      %433 = vmatprep.subr.bf16.mxu0 0
      %434 = vmatpush2.bf16.msra.mxu0 0
      %435 = vmatprep.subr.bf16.mxu0 0
      %436 = vmatpush2.bf16.msra.mxu0 0
      %437 = vmatprep.subr.bf16.mxu0 0
      %438 = vmatpush2.bf16.msra.mxu0 0
      %439 = vmatprep.subr.bf16.mxu0 0
      %440 = vmatpush2.bf16.msra.mxu0 0
      %441 = vmatprep.subr.bf16.mxu0 0
      %442 = vmatpush2.bf16.msra.mxu0 0
      %443 = vmatprep.subr.bf16.mxu0 0
      %444 = vmatpush2.bf16.msra.mxu0 0
      %445 = vmatprep.subr.bf16.mxu0 0
      %446 = vmatpush2.bf16.msra.mxu0 0
      %447 = vmatprep.subr.bf16.mxu0 0
      %448 = vmatpush2.bf16.msra.mxu0 0
      %449 = vmatprep.mubr.bf16.mxu0 0
      %450 = vmatmul.mubr.bf16.gmra.mxu0 %v411
      %v451 = vpop.f32.mrf.mxu0
      %v452 = vadd.f32 %v407, %v451
      %v453 = vpop.f32.mrf.mxu0
      %v454 = vpop.f32.mrf.mxu0
      %v455 = vpop.f32.mrf.mxu0
      %456 = vdwg.mxu0
      %v457 = vtanh.pop %v452
      %v458 = vpack.c.bf16 %v457, %v457
      %v459 = vld [vmem:[%s7] sm:$0xf]
      %v460 = vld [vmem:[%s7 + $0x4] sm:$0xf]
      %v461 = vld [vmem:[%s7 + $0x8] sm:$0xf]
      %v462 = vld [vmem:[%s7 + $0xc] sm:$0xf]
      %v467 = vunpack.c.l.b16 %v459
      %v468 = vunpack.c.l.b16 %v460
      %v469 = vunpack.c.l.b16 %v461
      %v470 = vunpack.c.l.b16 %v462
      %v471 = vpack.c.b16 %v468, %v467
      %v472 = vpack.c.b16 %v470, %v469
      %vm475 = vcmask 261120
      %v477 = vsel %vm475, %v458, 0
      %479 = vmatprep.subr.bf16.mxu0 0
      %480 = vmatpush1.bf16.msra.mxu0 0
      %481 = vmatprep.subr.bf16.mxu0 0
      %482 = vmatpush1.bf16.msra.mxu0 0
      %483 = vmatprep.subr.bf16.mxu0 0
      %484 = vmatpush1.bf16.msra.mxu0 0
      %485 = vmatprep.subr.bf16.mxu0 0
      %486 = vmatpush1.bf16.msra.mxu0 0
      %487 = vmatprep.subr.bf16.mxu0 0
      %488 = vmatpush1.bf16.msra.mxu0 0
      %489 = vmatprep.subr.bf16.mxu0 0
      %490 = vmatpush1.bf16.msra.mxu0 0
      %491 = vmatprep.subr.bf16.mxu0 0
      %492 = vmatpush1.bf16.msra.mxu0 %v472
      %493 = vmatprep.subr.bf16.mxu0 0
      %494 = vmatpush1.bf16.msra.mxu0 %v471
      %495 = vmatprep.subr.bf16.mxu0 0
      %496 = vmatpush2.bf16.msra.mxu0 0
      %497 = vmatprep.subr.bf16.mxu0 0
      %498 = vmatpush2.bf16.msra.mxu0 0
      %499 = vmatprep.subr.bf16.mxu0 0
      %500 = vmatpush2.bf16.msra.mxu0 0
      %501 = vmatprep.subr.bf16.mxu0 0
      %502 = vmatpush2.bf16.msra.mxu0 0
      %503 = vmatprep.subr.bf16.mxu0 0
      %504 = vmatpush2.bf16.msra.mxu0 0
      %505 = vmatprep.subr.bf16.mxu0 0
      %506 = vmatpush2.bf16.msra.mxu0 0
      %507 = vmatprep.subr.bf16.mxu0 0
      %508 = vmatpush2.bf16.msra.mxu0 0
      %509 = vmatprep.subr.bf16.mxu0 0
      %510 = vmatpush2.bf16.msra.mxu0 0
      %511 = vmatprep.mubr.bf16.mxu0 0
      %512 = vmatmul.mubr.bf16.gmra.mxu0 %v477
      %v513 = vpop.f32.mrf.mxu0
      %v514 = vadd.f32 0.0, %v513
      %v515 = vpop.f32.mrf.mxu0
      %v516 = vpop.f32.mrf.mxu0
      %v517 = vpop.f32.mrf.mxu0
      %518 = vdwg.mxu0
      %v519 = vpack.c.bf16 %v514, %v514
      %v520 = vpack.c.bf16 %v399, %v399
      %v522 = vsel %vm475, %v519, 0
      %v525 = vsel %vm475, %v520, 0
      %527 = vmatprep.subr.bf16.mxu0 0
      %528 = vmatpush1.bf16.xpose.msra.mxu0 0
      %529 = vmatprep.subr.bf16.mxu0 0
      %530 = vmatpush1.bf16.xpose.msra.mxu0 0
      %531 = vmatprep.subr.bf16.mxu0 0
      %532 = vmatpush1.bf16.xpose.msra.mxu0 0
      %533 = vmatprep.subr.bf16.mxu0 0
      %534 = vmatpush1.bf16.xpose.msra.mxu0 0
      %535 = vmatprep.subr.bf16.mxu0 0
      %536 = vmatpush1.bf16.xpose.msra.mxu0 0
      %537 = vmatprep.subr.bf16.mxu0 0
      %538 = vmatpush1.bf16.xpose.msra.mxu0 0
      %539 = vmatprep.subr.bf16.mxu0 0
      %540 = vmatpush1.bf16.xpose.msra.mxu0 0
      %541 = vmatprep.subr.bf16.mxu0 0
      %542 = vmatpush1.bf16.xpose.msra.mxu0 %v525
      %543 = vmatprep.subr.bf16.mxu0 0
      %544 = vmatpush2.bf16.xpose.msra.mxu0 0
      %545 = vmatprep.subr.bf16.mxu0 0
      %546 = vmatpush2.bf16.xpose.msra.mxu0 0
      %547 = vmatprep.subr.bf16.mxu0 0
      %548 = vmatpush2.bf16.xpose.msra.mxu0 0
      %549 = vmatprep.subr.bf16.mxu0 0
      %550 = vmatpush2.bf16.xpose.msra.mxu0 0
      %551 = vmatprep.subr.bf16.mxu0 0
      %552 = vmatpush2.bf16.xpose.msra.mxu0 0
      %553 = vmatprep.subr.bf16.mxu0 0
      %554 = vmatpush2.bf16.xpose.msra.mxu0 0
      %555 = vmatprep.subr.bf16.mxu0 0
      %556 = vmatpush2.bf16.xpose.msra.mxu0 0
      %557 = vmatprep.subr.bf16.mxu0 0
      %558 = vmatpush2.bf16.xpose.msra.mxu0 0
      %559 = vmatprep.mubr.bf16.mxu0 0
      %560 = vmatmul.mubr.bf16.gmra.mxu0 %v522
      %v561 = vpop.f32.mrf.mxu0
      %v562 = vadd.f32 0.0, %v561
      %v563 = vpop.f32.mrf.mxu0
      %v564 = vpop.f32.mrf.mxu0
      %v565 = vpop.f32.mrf.mxu0
      %566 = vdwg.mxu0
      %v567 = vmul.f32 %v562, 0.17677669
      %v568 = vld [vmem:[%s330] sm:$0xff]
      %v569 = vadd.f32 %v567, %v568
      %vm570 = vcmask 64512
      %v571 = vsel %vm570, %v569, -inf
      %572 = vmax.xlane.f32.xlu0 %v571
      %v573 = vpop.xlane.xlu0 %572
      %v574 = vrot.slane %v573, 4
      %v575 = vmax.f32 %v573, %v574
      %v576 = vrot.slane %v575, 2
      %v577 = vmax.f32 %v575, %v576
      %v578 = vrot.slane %v577, 1
      %v579 = vmax.f32 %v577, %v578
      %v580 = vsub.f32 %v569, %v579
      %v581 = vmul.f32 %v580, 1.442695
      %v582 = vpow.pop %v581
      %v583 = vsel %vm570, %v582, 0.0
      %584 = vadd.xlane.f32.xlu0 %v583
      %v585 = vpop.xlane.xlu0 %584
      %v586 = vrot.slane %v585, 4
      %v587 = vadd.f32 %v585, %v586
      %v588 = vrot.slane %v587, 2
      %v589 = vadd.f32 %v587, %v588
      %v590 = vrot.slane %v589, 1
      %v591 = vadd.f32 %v589, %v590
      %v592 = vmax.f32 %v591, 1e-30
      %v593 = vrcp.pop %v592
      %v594 = vmul.f32 %v582, %v593
      %595 = vst.msk [vmem:[%s334] sm:$0xff] %vm570, %v594
      %p596 = scmp.lt.s32.totalorder %s19, 1
      %s597 = scalar_select %p596, %s19, 1
      %s598 = smul.addr %s597, 8
      %s599 = scalar_lea.vmem %s8, %s598
      // Predicated region
      $region53: #{net_forward.1} parent=51 // pred_check
        %p600 = pneg %p220
      $region54: #{net_forward.1} parent=51 // pred_check_branch
        %602 = sbr.rel (%p600) target = $region56
      $region55: #{net_forward.1} parent=51 // pred_region
        _
      $region56: #{net_forward.1} parent=51 // pred_fallthru
        _
    $region52: #{net_forward.1} parent=5 // pred_fallthru
      _
    %p603 = scmp.le.s32.totalorder 2, %s14
    // Predicated region
    $region57: #{net_forward.1} parent=5 // pred_check
      %p604 = pneg %p603
    $region58: #{net_forward.1} parent=5 // pred_check_branch
      %606 = sbr.rel (%p604) target = $region60
    $region59: #{net_forward.1} parent=5 // pred_region
      %s607 = ssub.s32 %s14, 2
      // Predicated region
      $region61: #{net_forward.1} parent=59 // pred_check
        %p608 = pneg %p226
      $region62: #{net_forward.1} parent=59 // pred_check_branch
        %610 = sbr.rel (%p608) target = $region64
      $region63: #{net_forward.1} parent=59 // pred_region
        %p611 = scmp.lt.s32.totalorder %s20, 1
        %s612 = scalar_select %p611, %s20, 1
        %s613 = smul.addr %s612, 8
        %s614 = scalar_lea.vmem %s8, %s613
      $region64: #{net_forward.1} parent=59 // pred_fallthru
        _
    $region60: #{net_forward.1} parent=5 // pred_fallthru
      _
  $region6: #{net_forward.1} parent=0 // loop_footer
    %s18 = sadd.s32 1, %s14
  $region7: #{net_forward.1} parent=0 // loop_footer_branch
    %13 = sbr.rel target = $region3
  $region8: #{net_forward.1} parent=0 // loop_exit
    _

</llo_original>
